<compile_context>
chip_gen: v6e
topology: v6e:2x2x1
jax: 0.10.0
libtpu: 0.0.40
codegen_flags: <defaults>
</compile_context>

<pallas_src>
import functools

import jax
import jax.numpy as jnp
from jax.experimental import pallas as pl
from jax.experimental.pallas import tpu as pltpu


def _residual_attention_kernel(x_ref, w_ref, o_ref, xsum_ref, max_ref, *,
                               la, inv_s, s_true, ts, needs_mask):
    # x_ref:    (C, TS)   one sample's spatial tile (compute dtype, bf16)
    # w_ref:    (TN, C)   class-block of the 1x1-conv weight (bf16), resident
    #                     across the whole spatial sweep
    # o_ref:    (TN, 1)   per-(sample, class-block) score, written on last step
    # xsum_ref: (C, 1)    running spatial sum of x        (f32 scratch)
    # max_ref:  (TN, 1)   running spatial max of W @ x    (f32 scratch)
    k = pl.program_id(2)

    @pl.when(k == 0)
    def _init():
        xsum_ref[...] = jnp.zeros_like(xsum_ref)
        max_ref[...] = jnp.full_like(max_ref, -jnp.inf)

    x = x_ref[...]                                             # (C, TS)
    w = w_ref[...]                                             # (TN, C)

    # Mean path via linearity: mean_s(W x) == W @ sum_s(x) / S.  Per step we
    # only accumulate sum_s(x) with a tiny MXU mat-vec (zero-padded spatial
    # columns contribute 0); the W multiply is deferred to the finalize block.
    ones_s = jnp.ones((ts, 1), dtype=x.dtype)
    xsum_ref[...] += jnp.dot(x, ones_s, preferred_element_type=jnp.float32)

    # Max path needs the full product tile (bf16 MXU, f32 accumulation).
    y = jnp.dot(w, x, preferred_element_type=jnp.float32)      # (TN, TS)
    if needs_mask:
        # Zero-padded spatial columns give y == 0, which would corrupt the max
        # when all real activations are negative: mask them to -inf.
        col = jax.lax.broadcasted_iota(jnp.int32, y.shape, 1) + k * ts
        y = jnp.where(col < s_true, y, -jnp.inf)
    max_ref[...] = jnp.maximum(max_ref[...], jnp.max(y, axis=1, keepdims=True))

    @pl.when(k == pl.num_programs(2) - 1)
    def _finalize():
        # Small (TN, C) x (C, 1) mat-vec; xsum is cast to the weight dtype so
        # no large f32 weight transient is materialized (precision well within
        # the bf16-input error already present on the max path).
        y_sum = jnp.dot(w, xsum_ref[...].astype(w.dtype),
                        preferred_element_type=jnp.float32)    # (TN, 1)
        score = y_sum * inv_s + la * max_ref[...]
        o_ref[...] = score.astype(o_ref.dtype)


def _round_up(v, m):
    return ((v + m - 1) // m) * m


def _vmem_budgets():
    """(per-step working-set budget, vmem_limit_bytes or None), gen-aware."""
    mib = 1 << 20
    cap = None
    try:
        cap = int(getattr(pltpu.get_tpu_info(), "vmem_capacity_bytes", 0)) or None
    except Exception:
        cap = None
    if cap is None:
        return 8 * mib, None          # unknown: conservative, compiler defaults
    if cap >= 96 * mib:               # v5e / v6e class: 128 MiB physical VMEM
        return 16 * mib, 64 * mib
    if cap >= 48 * mib:               # v7x class: 64 MiB physical VMEM
        return 8 * mib, 36 * mib
    return 4 * mib, None              # small-VMEM parts: rely on defaults


def _pick_spatial_tile(s_pad, c, tn, x_itemsize, budget_bytes):
    """Largest 128-multiple divisor of the padded spatial extent whose per-step
    working set (double-buffered x block + f32 y product tile) fits budget."""
    m = s_pad // 128
    best = 128
    for d in range(1, m + 1):
        if m % d:
            continue
        ts = 128 * d
        if 2 * c * ts * x_itemsize + 4 * tn * ts <= budget_bytes:
            best = ts
    return best


def residual_attention(x_nchw, weight_oi, la=0.2, compute_dtype=jnp.bfloat16):
    """x_nchw: (B, C, H, W). weight_oi: (num_class, C). Returns (B, num_class) f32."""
    b, c, h, w = x_nchw.shape
    n = weight_oi.shape[0]
    s = h * w

    # NCHW -> (B, C, S): pure reshape.  The kernel is HBM-bound on x, so x
    # should already arrive in the compute dtype (bf16) from its producer;
    # casting here is only a fallback (it costs an extra HBM pass).
    x_bcs = x_nchw.reshape(b, c, s)
    if x_bcs.dtype != compute_dtype:
        x_bcs = x_bcs.astype(compute_dtype)

    # Lane-dense class padding (zero weight rows -> zero scores, sliced off).
    n_pad = _round_up(n, 128)
    w_pad = jnp.pad(weight_oi, ((0, n_pad - n), (0, 0))).astype(compute_dtype)

    # Class-block split only when the batch axis alone gives < 2 parallel
    # blocks (keeps both v7x TensorCores busy; weight rows are independent).
    ncb = 2 if (b < 2 and n_pad % 256 == 0) else 1
    tn = n_pad // ncb

    # Pad S to a 128 multiple and pick the spatial tile under the VMEM budget.
    budget, vmem_limit = _vmem_budgets()
    x_item = jnp.dtype(compute_dtype).itemsize
    s_pad = _round_up(s, 128)
    ts = _pick_spatial_tile(s_pad, c, tn, x_item, budget)
    if s_pad != s:
        x_bcs = jnp.pad(x_bcs, ((0, 0), (0, 0), (0, s_pad - s)))
    ns = s_pad // ts

    kernel = functools.partial(
        _residual_attention_kernel,
        la=float(la), inv_s=1.0 / float(s), s_true=s, ts=ts,
        needs_mask=(s_pad != s))

    cp_kwargs = dict(dimension_semantics=("parallel", "parallel", "arbitrary"))
    if vmem_limit is not None:
        cp_kwargs["vmem_limit_bytes"] = vmem_limit

    out = pl.pallas_call(
        kernel,
        out_shape=jax.ShapeDtypeStruct((b, n_pad, 1), jnp.float32),
        grid_spec=pltpu.PrefetchScalarGridSpec(
            num_scalar_prefetch=0,
            grid=(b, ncb, ns),
            in_specs=[
                # x: one sample, full channels, one spatial tile.
                pl.BlockSpec((None, c, ts), lambda i, j, k: (i, 0, k)),
                # weight: one class block, full channels; the block index does
                # not change along the spatial axis, so it stays resident.
                # TODO(synk): pipeline_mode=pl.Buffered(1) here would drop one
                # redundant weight buffer on small-VMEM parts.
                pl.BlockSpec((tn, c), lambda i, j, k: (j, 0)),
            ],
            out_specs=pl.BlockSpec((None, tn, 1), lambda i, j, k: (i, j, 0)),
            scratch_shapes=[
                pltpu.VMEM((c, 1), jnp.float32),    # running sum_s(x)
                pltpu.VMEM((tn, 1), jnp.float32),   # running max_s(W x)
            ],
        ),
        compiler_params=pltpu.CompilerParams(**cp_kwargs),
    )(x_bcs, w_pad)

    return out[:, :n, 0]


def residual_attention_ref(x_nchw, weight_oi, la=0.2):
    """Pure-JAX f32 reference mirroring the PyTorch forward."""
    b, c, h, w = x_nchw.shape
    y_raw = jnp.einsum("nc,bcs->bns", weight_oi, x_nchw.reshape(b, c, h * w))
    return jnp.mean(y_raw, axis=2) + la * jnp.max(y_raw, axis=2)


if __name__ == "__main__":
    # Small deterministic shapes; num_class != 128 exercises class padding and
    # S = 64 (< 128) exercises spatial padding + in-kernel -inf masking.
    batch, channel, num_class = 2, 32, 100
    height = width = 8
    la = 0.2

    key = jax.random.PRNGKey(0)
    kx, kw = jax.random.split(key)
    x_f32 = jax.random.normal(kx, (batch, channel, height, width), dtype=jnp.float32)
    # nn.Conv2d(channel, num_class, 1, bias=False) weight is (N, C, 1, 1);
    # deterministic synthetic init (kaiming-ish scale), squeezed to (N, C).
    weight = (jax.random.normal(kw, (num_class, channel), dtype=jnp.float32)
              * (1.0 / jnp.sqrt(channel)))

    # Feed activations in bf16 (the kernel is HBM-bound on x; a bf16 producer
    # or a fused cast upstream halves that traffic).
    x_bf16 = x_f32.astype(jnp.bfloat16)

    out = residual_attention(x_bf16, weight, la=la)
    out = jax.block_until_ready(out)

    ref = residual_attention_ref(x_f32, weight, la=la)
    assert out.shape == (batch, num_class)
    # bf16 activations/weights with f32 accumulation: loosened tolerance.
    assert jnp.allclose(out, ref, atol=3e-2, rtol=3e-2), "mismatch vs reference"

    print("KERNEL_OK")
</pallas_src>

<mosaic_0001>
module attributes {stable_mosaic.version = 11 : i64} {
  func.func @_residual_attention_kernel(%arg0: i32, %arg1: i32, %arg2: i32, %arg3: memref<1x32x128xbf16, #tpu.memory_space<vmem>>, %arg4: memref<128x32xbf16, #tpu.memory_space<vmem>>, %arg5: memref<1x128x1xf32, #tpu.memory_space<vmem>>, %arg6: memref<32x1xf32, #tpu.memory_space<vmem>>, %arg7: memref<128x1xf32, #tpu.memory_space<vmem>>) attributes {dimension_semantics = [#tpu.dimension_semantics<parallel>, #tpu.dimension_semantics<parallel>, #tpu.dimension_semantics<arbitrary>], iteration_bounds = array<i64: 2, 1, 1>, scalar_prefetch = 0 : i64, scratch_operands = 2 : i64, tpu.core_type = #tpu.core_type<tc>, window_params = [{transform_indices = @transform_0, window_bounds = array<i64: 1, 32, 128>}, {transform_indices = @transform_1, window_bounds = array<i64: 128, 32>}, {transform_indices = @transform_2, window_bounds = array<i64: 1, 128, 1>}]} {
    %c0_i32 = arith.constant 0 : i32
    %0 = arith.cmpi eq, %arg2, %c0_i32 : i32
    %1 = arith.extui %0 : i1 to i32
    %c0_i32_0 = arith.constant 0 : i32
    %2 = arith.cmpi ne, %1, %c0_i32_0 : i32
    scf.if %2 {
      %cst_19 = arith.constant 0.000000e+00 : f32
      %28 = vector.broadcast %cst_19 : f32 to vector<32x1xf32>
      %c0_20 = arith.constant 0 : index
      %c0_21 = arith.constant 0 : index
      %29 = vector.load %arg6[%c0_20, %c0_21] : memref<32x1xf32, #tpu.memory_space<vmem>>, vector<32x1xf32>
      tpu.vector_store %arg6[%c0_20, %c0_21], %28 {strides = array<i32>} : memref<32x1xf32, #tpu.memory_space<vmem>>, vector<32x1xf32>,
      %cst_22 = arith.constant 0xFF800000 : f32
      %30 = vector.broadcast %cst_22 : f32 to vector<128x1xf32>
      %c0_23 = arith.constant 0 : index
      %c0_24 = arith.constant 0 : index
      %31 = vector.load %arg7[%c0_23, %c0_24] : memref<128x1xf32, #tpu.memory_space<vmem>>, vector<128x1xf32>
      tpu.vector_store %arg7[%c0_23, %c0_24], %30 {strides = array<i32>} : memref<128x1xf32, #tpu.memory_space<vmem>>, vector<128x1xf32>,
    } else {
    }
    %c0 = arith.constant 0 : index
    %c0_1 = arith.constant 0 : index
    %c0_2 = arith.constant 0 : index
    %3 = vector.load %arg3[%c0, %c0_1, %c0_2] : memref<1x32x128xbf16, #tpu.memory_space<vmem>>, vector<1x32x128xbf16>
    %4 = vector.shape_cast %3 : vector<1x32x128xbf16> to vector<32x128xbf16>
    %c0_3 = arith.constant 0 : index
    %c0_4 = arith.constant 0 : index
    %5 = vector.load %arg4[%c0_3, %c0_4] : memref<128x32xbf16, #tpu.memory_space<vmem>>, vector<128x32xbf16>
    %cst = arith.constant 1.000000e+00 : bf16
    %6 = vector.broadcast %cst : bf16 to vector<128x1xbf16>
    %c0_5 = arith.constant 0 : index
    %c0_6 = arith.constant 0 : index
    %7 = vector.load %arg6[%c0_5, %c0_6] : memref<32x1xf32, #tpu.memory_space<vmem>>, vector<32x1xf32>
    %cst_7 = arith.constant dense<0.000000e+00> : vector<32x1xf32>
    %8 = tpu.matmul %4, %6, %cst_7 {dimension_numbers = #tpu.dot_dimension_numbers<[1], [0], [0], [1], [0, 0, 1, 1], [], []>} : vector<32x128xbf16>, vector<128x1xbf16>, vector<32x1xf32> -> vector<32x1xf32>
    %9 = arith.addf %7, %8 : vector<32x1xf32>
    %c0_8 = arith.constant 0 : index
    %c0_9 = arith.constant 0 : index
    %10 = vector.load %arg6[%c0_8, %c0_9] : memref<32x1xf32, #tpu.memory_space<vmem>>, vector<32x1xf32>
    tpu.vector_store %arg6[%c0_8, %c0_9], %9 {strides = array<i32>} : memref<32x1xf32, #tpu.memory_space<vmem>>, vector<32x1xf32>,
    %cst_10 = arith.constant dense<0.000000e+00> : vector<128x128xf32>
    %11 = tpu.matmul %5, %4, %cst_10 {dimension_numbers = #tpu.dot_dimension_numbers<[1], [0], [0], [1], [0, 0, 1, 1], [], []>} : vector<128x32xbf16>, vector<32x128xbf16>, vector<128x128xf32> -> vector<128x128xf32>
    %12 = tpu.iota {dimensions = array<i32: 1>} : vector<128x128xi32>
    %c128_i32 = arith.constant 128 : i32
    %13 = arith.muli %arg2, %c128_i32 : i32
    %14 = vector.broadcast %13 : i32 to vector<128x128xi32>
    %15 = arith.addi %12, %14 : vector<128x128xi32>
    %c64_i32 = arith.constant 64 : i32
    %16 = vector.broadcast %c64_i32 : i32 to vector<128x128xi32>
    %17 = arith.cmpi slt, %15, %16 : vector<128x128xi32>
    %cst_11 = arith.constant 0xFF800000 : f32
    %18 = vector.broadcast %cst_11 : f32 to vector<128x128xf32>
    %19 = arith.select %17, %11, %18 : vector<128x128xi1>, vector<128x128xf32>
    %c0_12 = arith.constant 0 : index
    %c0_13 = arith.constant 0 : index
    %20 = vector.load %arg7[%c0_12, %c0_13] : memref<128x1xf32, #tpu.memory_space<vmem>>, vector<128x1xf32>
    %cst_14 = arith.constant dense<0xFF800000> : vector<128xf32>
    %21 = vector.multi_reduction <maximumf>, %19, %cst_14 [1] : vector<128x128xf32> to vector<128xf32>
    %22 = vector.shape_cast %21 : vector<128xf32> to vector<128x1xf32>
    %23 = arith.maximumf %20, %22 : vector<128x1xf32>
    %c0_15 = arith.constant 0 : index
    %c0_16 = arith.constant 0 : index
    %24 = vector.load %arg7[%c0_15, %c0_16] : memref<128x1xf32, #tpu.memory_space<vmem>>, vector<128x1xf32>
    tpu.vector_store %arg7[%c0_15, %c0_16], %23 {strides = array<i32>} : memref<128x1xf32, #tpu.memory_space<vmem>>, vector<128x1xf32>,
    %c0_i32_17 = arith.constant 0 : i32
    %25 = arith.cmpi eq, %arg2, %c0_i32_17 : i32
    %26 = arith.extui %25 : i1 to i32
    %c0_i32_18 = arith.constant 0 : i32
    %27 = arith.cmpi ne, %26, %c0_i32_18 : i32
    scf.if %27 {
      %c0_19 = arith.constant 0 : index
      %c0_20 = arith.constant 0 : index
      %28 = vector.load %arg6[%c0_19, %c0_20] : memref<32x1xf32, #tpu.memory_space<vmem>>, vector<32x1xf32>
      %29 = arith.truncf %28 : vector<32x1xf32> to vector<32x1xbf16>
      %cst_21 = arith.constant dense<0.000000e+00> : vector<128x1xf32>
      %30 = tpu.matmul %5, %29, %cst_21 {dimension_numbers = #tpu.dot_dimension_numbers<[1], [0], [0], [1], [0, 0, 1, 1], [], []>} : vector<128x32xbf16>, vector<32x1xbf16>, vector<128x1xf32> -> vector<128x1xf32>
      %cst_22 = arith.constant 1.562500e-02 : f32
      %31 = vector.broadcast %cst_22 : f32 to vector<128x1xf32>
      %32 = arith.mulf %30, %31 : vector<128x1xf32>
      %c0_23 = arith.constant 0 : index
      %c0_24 = arith.constant 0 : index
      %33 = vector.load %arg7[%c0_23, %c0_24] : memref<128x1xf32, #tpu.memory_space<vmem>>, vector<128x1xf32>
      %cst_25 = arith.constant 2.000000e-01 : f32
      %34 = vector.broadcast %cst_25 : f32 to vector<128x1xf32>
      %35 = arith.mulf %34, %33 : vector<128x1xf32>
      %36 = arith.addf %32, %35 : vector<128x1xf32>
      %c0_26 = arith.constant 0 : index
      %c0_27 = arith.constant 0 : index
      %c0_28 = arith.constant 0 : index
      %37 = vector.load %arg5[%c0_26, %c0_27, %c0_28] : memref<1x128x1xf32, #tpu.memory_space<vmem>>, vector<1x128x1xf32>
      %38 = vector.shape_cast %37 : vector<1x128x1xf32> to vector<128x1xf32>
      %39 = vector.shape_cast %36 : vector<128x1xf32> to vector<1x128x1xf32>
      tpu.vector_store %arg5[%c0_26, %c0_27, %c0_28], %39 {strides = array<i32>} : memref<1x128x1xf32, #tpu.memory_space<vmem>>, vector<1x128x1xf32>,
    } else {
    }
    return
  }
  func.func @transform_0(%arg0: i32, %arg1: i32, %arg2: i32) -> (i32, i32, i32) {
    %c0_i32 = arith.constant 0 : i32
    %c0_i32_0 = arith.constant 0 : i32
    return %arg0, %c0_i32, %arg2 : i32, i32, i32
  }
  func.func @transform_1(%arg0: i32, %arg1: i32, %arg2: i32) -> (i32, i32) {
    %c0_i32 = arith.constant 0 : i32
    %c0_i32_0 = arith.constant 0 : i32
    return %arg1, %c0_i32 : i32, i32
  }
  func.func @transform_2(%arg0: i32, %arg1: i32, %arg2: i32) -> (i32, i32, i32) {
    %c0_i32 = arith.constant 0 : i32
    %c0_i32_0 = arith.constant 0 : i32
    return %arg0, %arg1, %c0_i32 : i32, i32, i32
  }
}

</mosaic_0001>

<llo_original>
// kernel: tpu_custom_call.1
$region0: #{tpu_custom_call.1}
  #allocation0 [shape = 'u32[]', space=smem, size = 0x4, offset = 0x4, fixed_abs, tag = 'smem constant byte address 0x4 - core index']
  #allocation1 [shape = 'u32[144,128]{1,0:T(1,128)}', space=vmem, size = 0x12000, scoped, tag = 'internal scratch']
  #allocation2 [shape = 'f32[32,1]{1,0:T(8,128)}', space=vmem, size = 0x4000, scoped, tag = 'scratch operand']
  #allocation3 [shape = 'f32[128,1]{1,0:T(8,128)}', space=vmem, size = 0x10000, scoped, tag = 'scratch operand']
  %s0 = inlined_call_operand.vmem [shape: bf16[2,32,128], index: 0, kind: input, shape index: {}]
  %s1 = inlined_call_operand.vmem [shape: bf16[128,32], index: 1, kind: input, shape index: {}]
  %s2 = inlined_call_operand.vmem [shape: f32[2,128,1], index: 2, kind: output, shape index: {}]
  %s3 = sld [smem:[#allocation0]]
  $region49: #{tpu_custom_call.1} parent=0
    _
  %s5 = ssub.s32 1, %s3
  %s6 = scalar_select 0, %s5, %s3
  loop: start=0, step=1, limit=4
  $region2: #{tpu_custom_call.1} parent=0 // loop_pre_header
    _
  $region3: #{tpu_custom_call.1} parent=0 // loop_header
    %s8 = sphi 0, %s12
    %p9 = scmp.ge.s32.totalorder %s8, 4
    %s15 = sphi 0, %s34
    %s16 = sphi 0, %s30
    %s17 = sphi 0, %s26
    %s18 = sphi 0, %s15
    %s19 = sphi 0, %s16
    %s20 = sphi 0, %s17
    %s21 = sphi 0, %s18
    %s22 = sphi 0, %s19
    %s23 = sphi 0, %s20
    %s39 = sphi 0, %s41
    %s42 = sphi 0, %s39
    %s43 = sphi 0, %s42
    %s59 = sphi 0, %s43
    %s65 = sphi 0, %s67
    %s68 = sphi 0, %s65
    %s69 = sphi 0, %s68
    %s85 = sphi 0, %s69
    %s93 = sphi 0, %s95
    %s96 = sphi 0, %s93
    %s97 = sphi 0, %s96
    %s113 = sphi 0, %s97
  $region4: #{tpu_custom_call.1} parent=0 // loop_header_branch
    %11 = sbr.rel (%p9) target = $region8
  $region5: #{tpu_custom_call.1} parent=0 // loop_body
    %s13 = ssub.s32 %s8, 1
    %s14 = ssub.s32 %s8, 2
    %s24 = sadd.s32 1, %s17
    %p25 = scmp.ge.s32.totalorder %s24, 1
    %s26 = scalar_select %p25, 0, %s24
    %s27 = sadd.s32 1, %s16
    %s28 = scalar_select %p25, %s27, %s16
    %p29 = scmp.ge.s32.totalorder %s28, 1
    %s30 = scalar_select %p29, 0, %s28
    %s31 = sadd.s32 1, %s15
    %s32 = scalar_select %p29, %s31, %s15
    %p33 = scmp.ge.s32.totalorder %s32, 2
    %s34 = scalar_select %p33, 0, %s32
    %s35 = ssub.s32 %s15, %s34
    %s36 = ssub.s32 %s17, %s26
    %s37 = sor.u32 %s35, %s36
    %p38 = scmp.eq.s32.totalorder %s37, 0
    %s40 = sadd.s32 %s39, 1
    %s41 = scalar_select %p38, %s39, %s40
    %p44 = pneg %p38
    %p45 = scmp.eq.s32.totalorder %s8, 1
    %p46 = por %p44, %p45
    %p47 = scmp.ne.s32.totalorder %s39, %s42
    %p48 = scmp.eq.s32.totalorder %s8, 0
    %p49 = por %p47, %p48
    %p50 = scmp.ne.s32.totalorder %s39, %s42
    %p51 = scmp.eq.s32.totalorder %s13, 1
    %p52 = por %p50, %p51
    %p53 = scmp.ne.s32.totalorder %s42, %s43
    %p54 = scmp.eq.s32.totalorder %s13, 0
    %p55 = por %p53, %p54
    %p56 = scmp.ne.s32.totalorder %s42, %s43
    %p57 = scmp.eq.s32.totalorder %s14, 1
    %p58 = por %p56, %p57
    %p60 = scmp.ne.s32.totalorder %s43, %s59
    %p61 = scmp.eq.s32.totalorder %s14, 0
    %p62 = por %p60, %p61
    %s63 = ssub.s32 %s16, %s30
    %p64 = scmp.eq.s32.totalorder %s63, 0
    %s66 = sadd.s32 %s65, 1
    %s67 = scalar_select %p64, %s65, %s66
    %p70 = pneg %p64
    %p71 = scmp.eq.s32.totalorder %s8, 1
    %p72 = por %p70, %p71
    %p73 = scmp.ne.s32.totalorder %s65, %s68
    %p74 = scmp.eq.s32.totalorder %s8, 0
    %p75 = por %p73, %p74
    %p76 = scmp.ne.s32.totalorder %s65, %s68
    %p77 = scmp.eq.s32.totalorder %s13, 1
    %p78 = por %p76, %p77
    %p79 = scmp.ne.s32.totalorder %s68, %s69
    %p80 = scmp.eq.s32.totalorder %s13, 0
    %p81 = por %p79, %p80
    %p82 = scmp.ne.s32.totalorder %s68, %s69
    %p83 = scmp.eq.s32.totalorder %s14, 1
    %p84 = por %p82, %p83
    %p86 = scmp.ne.s32.totalorder %s69, %s85
    %p87 = scmp.eq.s32.totalorder %s14, 0
    %p88 = por %p86, %p87
    %s89 = ssub.s32 %s15, %s34
    %s90 = ssub.s32 %s16, %s30
    %s91 = sor.u32 %s89, %s90
    %p92 = scmp.eq.s32.totalorder %s91, 0
    %s94 = sadd.s32 %s93, 1
    %s95 = scalar_select %p92, %s93, %s94
    %p98 = pneg %p92
    %p99 = scmp.eq.s32.totalorder %s8, 1
    %p100 = por %p98, %p99
    %p101 = scmp.ne.s32.totalorder %s93, %s96
    %p102 = scmp.eq.s32.totalorder %s8, 0
    %p103 = por %p101, %p102
    %p104 = scmp.ne.s32.totalorder %s93, %s96
    %p105 = scmp.eq.s32.totalorder %s13, 1
    %p106 = por %p104, %p105
    %p107 = scmp.ne.s32.totalorder %s96, %s97
    %p108 = scmp.eq.s32.totalorder %s13, 0
    %p109 = por %p107, %p108
    %p110 = scmp.ne.s32.totalorder %s96, %s97
    %p111 = scmp.eq.s32.totalorder %s14, 1
    %p112 = por %p110, %p111
    %p114 = scmp.ne.s32.totalorder %s97, %s113
    %p115 = scmp.eq.s32.totalorder %s14, 0
    %p116 = por %p114, %p115
    %p117 = scmp.le.s32.totalorder 1, %s8
    %p118 = scmp.lt.s32.totalorder %s8, 3
    %p119 = pnand %p117, %p118
    %p120 = pneg %p119
    // Predicated region
    $region9: #{tpu_custom_call.1} parent=5 // pred_check
      _
    $region10: #{tpu_custom_call.1} parent=5 // pred_check_branch
      %122 = sbr.rel (%p119) target = $region12
    $region11: #{tpu_custom_call.1} parent=5 // pred_region
      %s123 = ssub.s32 %s8, 1
      // Predicated region
      $region13: #{tpu_custom_call.1} parent=11 // pred_check
        %p124 = pneg %p81
      $region14: #{tpu_custom_call.1} parent=11 // pred_check_branch
        %126 = sbr.rel (%p124) target = $region16
      $region15: #{tpu_custom_call.1} parent=11 // pred_region
        %s127 = smul.u32 16, %s19
        %p128 = scmp.lt.s32.totalorder %s127, 15
        %s129 = scalar_select %p128, %s127, 15
        %s130 = smul.addr %s129, 4
        %s131 = scalar_lea.vmem %s1, %s130
        %s132 = smul.u32 16, %s19
      $region16: #{tpu_custom_call.1} parent=11 // pred_fallthru
        _
    $region12: #{tpu_custom_call.1} parent=5 // pred_fallthru
      _
    %p133 = scmp.lt.s32.totalorder %s8, 2
    // Predicated region
    $region17: #{tpu_custom_call.1} parent=5 // pred_check
      %p134 = pneg %p133
    $region18: #{tpu_custom_call.1} parent=5 // pred_check_branch
      %136 = sbr.rel (%p134) target = $region20
    $region19: #{tpu_custom_call.1} parent=5 // pred_region
      // Predicated region
      $region21: #{tpu_custom_call.1} parent=19 // pred_check
        %p137 = pneg %p49
      $region22: #{tpu_custom_call.1} parent=19 // pred_check_branch
        %139 = sbr.rel (%p137) target = $region24
      $region23: #{tpu_custom_call.1} parent=19 // pred_region
        %p140 = scmp.lt.s32.totalorder %s15, 1
        %s141 = scalar_select %p140, %s15, 1
        %p142 = scmp.lt.s32.totalorder %s17, 0
        %s143 = scalar_select %p142, %s17, 0
        %s144 = smul.addr %s141, 4
        %s145 = sadd.s32 %s143, %s144
        %s146 = smul.addr %s145, 4
        %s147 = scalar_lea.vmem %s0, %s146
      $region24: #{tpu_custom_call.1} parent=19 // pred_fallthru
        _
    $region20: #{tpu_custom_call.1} parent=5 // pred_fallthru
      _
    %p148 = scmp.le.s32.totalorder 1, %s8
    %p149 = scmp.lt.s32.totalorder %s8, 3
    %p150 = pnand %p148, %p149
    %p151 = pneg %p150
    // Predicated region
    $region25: #{tpu_custom_call.1} parent=5 // pred_check
      _
    $region26: #{tpu_custom_call.1} parent=5 // pred_check_branch
      %153 = sbr.rel (%p150) target = $region28
    $region27: #{tpu_custom_call.1} parent=5 // pred_region
      %s154 = ssub.s32 %s8, 1
      %p155 = scmp.lt.s32.totalorder %s18, 1
      %s156 = scalar_select %p155, %s18, 1
      %p157 = scmp.lt.s32.totalorder %s20, 0
      %s158 = scalar_select %p157, %s20, 0
      %s159 = smul.addr %s156, 4
      %s160 = sadd.s32 %s158, %s159
      %s161 = smul.addr %s160, 4
      %s162 = scalar_lea.vmem %s0, %s161
      %p163 = pneg %p55
      %p164 = pneg %p52
      %s165 = smul.u32 16, %s19
      %p166 = scmp.lt.s32.totalorder %s165, 15
      %s167 = scalar_select %p166, %s165, 15
      %s168 = smul.addr %s167, 4
      %s169 = scalar_lea.vmem %s1, %s168
      %p170 = pneg %p81
      %p171 = pneg %p78
      %p172 = pneg %p109
      %p173 = pneg %p106
      %s174 = smul.u32 16, %s19
      %p175 = scmp.lt.s32.totalorder %s18, 1
      %s176 = scalar_select %p175, %s18, 1
      %p177 = scmp.lt.s32.totalorder %s174, 15
      %s178 = scalar_select %p177, %s174, 15
      %s179 = smul.addr %s176, 16
      %s180 = sadd.s32 %s178, %s179
      %s181 = smul.addr %s180, 8
      %s182 = scalar_lea.vmem %s2, %s181
      %p183 = scmp.lt.s32.totalorder %s18, 1
      %s184 = scalar_select %p183, %s18, 1
      %p185 = scmp.lt.s32.totalorder %s20, 0
      %s186 = scalar_select %p185, %s20, 0
      %s187 = smul.addr %s184, 4
      %s188 = sadd.s32 %s186, %s187
      %s189 = smul.addr %s188, 4
      %s190 = scalar_lea.vmem %s0, %s189
      %s191 = smul.u32 16, %s19
      %p192 = scmp.lt.s32.totalorder %s191, 15
      %s193 = scalar_select %p192, %s191, 15
      %s194 = smul.addr %s193, 4
      %s195 = scalar_lea.vmem %s1, %s194
      %s196 = smul.u32 16, %s19
      %s197 = smul.u32 16, %s19
      %p198 = scmp.lt.s32.totalorder %s18, 1
      %s199 = scalar_select %p198, %s18, 1
      %p200 = scmp.lt.s32.totalorder %s197, 15
      %s201 = scalar_select %p200, %s197, 15
      %s202 = smul.addr %s199, 16
      %s203 = sadd.s32 %s201, %s202
      %s204 = smul.addr %s203, 8
      %s205 = scalar_lea.vmem %s2, %s204
      %s206 = smul.u32 16, %s19
      %p209 = scmp.eq.s32.totalorder %s20, 0
      // Predicated region
      $region29: #{tpu_custom_call.1} parent=27 // pred_check
        %p210 = pneg %p209
      $region30: #{tpu_custom_call.1} parent=27 // pred_check_branch
        %212 = sbr.rel (%p210) target = $region32
      $region31: #{tpu_custom_call.1} parent=27 // pred_region
        %vm213 = vcmask 7168
        %214 = vst.msk [vmem:[#allocation2] sm:$0xff] %vm213, 0.0
        %215 = vst.msk [vmem:[#allocation2 + $0x8] sm:$0xff] %vm213, 0.0
        %216 = vst.msk [vmem:[#allocation2 + $0x10] sm:$0xff] %vm213, 0.0
        %217 = vst.msk [vmem:[#allocation2 + $0x18] sm:$0xff] %vm213, 0.0
        %218 = vst.msk [vmem:[#allocation3] sm:$0xff] %vm213, -inf
        %219 = vst.msk [vmem:[#allocation3 + $0x8] sm:$0xff] %vm213, -inf
        %220 = vst.msk [vmem:[#allocation3 + $0x10] sm:$0xff] %vm213, -inf
        %221 = vst.msk [vmem:[#allocation3 + $0x18] sm:$0xff] %vm213, -inf
        %222 = vst.msk [vmem:[#allocation3 + $0x20] sm:$0xff] %vm213, -inf
        %223 = vst.msk [vmem:[#allocation3 + $0x28] sm:$0xff] %vm213, -inf
        %224 = vst.msk [vmem:[#allocation3 + $0x30] sm:$0xff] %vm213, -inf
        %225 = vst.msk [vmem:[#allocation3 + $0x38] sm:$0xff] %vm213, -inf
        %226 = vst.msk [vmem:[#allocation3 + $0x40] sm:$0xff] %vm213, -inf
        %227 = vst.msk [vmem:[#allocation3 + $0x48] sm:$0xff] %vm213, -inf
        %228 = vst.msk [vmem:[#allocation3 + $0x50] sm:$0xff] %vm213, -inf
        %229 = vst.msk [vmem:[#allocation3 + $0x58] sm:$0xff] %vm213, -inf
        %230 = vst.msk [vmem:[#allocation3 + $0x60] sm:$0xff] %vm213, -inf
        %231 = vst.msk [vmem:[#allocation3 + $0x68] sm:$0xff] %vm213, -inf
        %232 = vst.msk [vmem:[#allocation3 + $0x70] sm:$0xff] %vm213, -inf
        %233 = vst.msk [vmem:[#allocation3 + $0x78] sm:$0xff] %vm213, -inf
      $region32: #{tpu_custom_call.1} parent=27 // pred_fallthru
        _
      %v234 = vld [vmem:[%s190] sm:$0xf]
      %v235 = vld [vmem:[%s190 + $0x4] sm:$0xf]
      %v236 = vld [vmem:[%s190 + $0x8] sm:$0xf]
      %v237 = vld [vmem:[%s190 + $0xc] sm:$0xf]
      %v238 = vld [vmem:[%s195] sm:$0xf]
      %v239 = vld [vmem:[%s195 + $0x4] sm:$0xf]
      %v240 = vld [vmem:[%s195 + $0x8] sm:$0xf]
      %v241 = vld [vmem:[%s195 + $0xc] sm:$0xf]
      %v242 = vld [vmem:[%s195 + $0x10] sm:$0xf]
      %v243 = vld [vmem:[%s195 + $0x14] sm:$0xf]
      %v244 = vld [vmem:[%s195 + $0x18] sm:$0xf]
      %v245 = vld [vmem:[%s195 + $0x1c] sm:$0xf]
      %v246 = vld [vmem:[%s195 + $0x20] sm:$0xf]
      %v247 = vld [vmem:[%s195 + $0x24] sm:$0xf]
      %v248 = vld [vmem:[%s195 + $0x28] sm:$0xf]
      %v249 = vld [vmem:[%s195 + $0x2c] sm:$0xf]
      %v250 = vld [vmem:[%s195 + $0x30] sm:$0xf]
      %v251 = vld [vmem:[%s195 + $0x34] sm:$0xf]
      %v252 = vld [vmem:[%s195 + $0x38] sm:$0xf]
      %v253 = vld [vmem:[%s195 + $0x3c] sm:$0xf]
      %v254 = vld [vmem:[#allocation2] sm:$0xff]
      %v255 = vld [vmem:[#allocation2 + $0x8] sm:$0xff]
      %v256 = vld [vmem:[#allocation2 + $0x10] sm:$0xff]
      %v257 = vld [vmem:[#allocation2 + $0x18] sm:$0xff]
      %v262 = vunpack.c.l.b16 %v234
      %v263 = vunpack.c.l.b16 %v235
      %v264 = vunpack.c.l.b16 %v236
      %v265 = vunpack.c.l.b16 %v237
      %v266 = vpack.c.b16 %v263, %v262
      %v267 = vpack.c.b16 %v265, %v264
      %270 = vmatprep.subr.bf16.mxu0 0
      %271 = vmatpush1.bf16.msra.mxu0 1065369472
      %272 = vmatprep.subr.bf16.mxu0 0
      %273 = vmatpush1.bf16.msra.mxu0 1065369472
      %274 = vmatprep.subr.bf16.mxu0 0
      %275 = vmatpush1.bf16.msra.mxu0 1065369472
      %276 = vmatprep.subr.bf16.mxu0 0
      %277 = vmatpush1.bf16.msra.mxu0 1065369472
      %278 = vmatprep.subr.bf16.mxu0 0
      %279 = vmatpush1.bf16.msra.mxu0 1065369472
      %280 = vmatprep.subr.bf16.mxu0 0
      %281 = vmatpush1.bf16.msra.mxu0 1065369472
      %282 = vmatprep.subr.bf16.mxu0 0
      %283 = vmatpush1.bf16.msra.mxu0 1065369472
      %284 = vmatprep.subr.bf16.mxu0 0
      %285 = vmatpush1.bf16.msra.mxu0 1065369472
      %286 = vmatprep.subr.bf16.mxu0 0
      %287 = vmatpush2.bf16.msra.mxu0 0
      %288 = vmatprep.subr.bf16.mxu0 0
      %289 = vmatpush2.bf16.msra.mxu0 0
      %290 = vmatprep.subr.bf16.mxu0 0
      %291 = vmatpush2.bf16.msra.mxu0 0
      %292 = vmatprep.subr.bf16.mxu0 0
      %293 = vmatpush2.bf16.msra.mxu0 0
      %294 = vmatprep.subr.bf16.mxu0 0
      %295 = vmatpush2.bf16.msra.mxu0 0
      %296 = vmatprep.subr.bf16.mxu0 0
      %297 = vmatpush2.bf16.msra.mxu0 0
      %298 = vmatprep.subr.bf16.mxu0 0
      %299 = vmatpush2.bf16.msra.mxu0 0
      %300 = vmatprep.subr.bf16.mxu0 0
      %301 = vmatpush2.bf16.msra.mxu0 0
      %302 = vmatprep.mubr.bf16.mxu0 0
      %303 = vmatmul.mubr.bf16.gmra.mxu0 %v266
      %v304 = vpop.f32.mrf.mxu0
      %v305 = vadd.f32 0.0, %v304
      %v306 = vpop.f32.mrf.mxu0
      %v307 = vpop.f32.mrf.mxu0
      %v308 = vadd.f32 0.0, %v307
      %v309 = vpop.f32.mrf.mxu0
      %310 = vmatprep.mubr.bf16.mxu0 0
      %311 = vmatmul.mubr.bf16.gmra.mxu0 %v267
      %v312 = vpop.f32.mrf.mxu0
      %v313 = vadd.f32 0.0, %v312
      %v314 = vpop.f32.mrf.mxu0
      %v315 = vpop.f32.mrf.mxu0
      %v316 = vadd.f32 0.0, %v315
      %v317 = vpop.f32.mrf.mxu0
      %318 = vdwg.mxu0
      %v319 = vadd.f32 %v254, %v305
      %v320 = vadd.f32 %v255, %v308
      %v321 = vadd.f32 %v256, %v313
      %v322 = vadd.f32 %v257, %v316
      %vm323 = vcmask 7168
      %324 = vst.msk [vmem:[#allocation2] sm:$0xff] %vm323, %v319
      %325 = vst.msk [vmem:[#allocation2 + $0x8] sm:$0xff] %vm323, %v320
      %326 = vst.msk [vmem:[#allocation2 + $0x10] sm:$0xff] %vm323, %v321
      %327 = vst.msk [vmem:[#allocation2 + $0x18] sm:$0xff] %vm323, %v322
      %v344 = vunpack.c.l.b16 %v238
      %v345 = vunpack.c.l.b16 %v239
      %v346 = vunpack.c.l.b16 %v240
      %v347 = vunpack.c.l.b16 %v241
      %v348 = vunpack.c.l.b16 %v242
      %v349 = vunpack.c.l.b16 %v243
      %v350 = vunpack.c.l.b16 %v244
      %v351 = vunpack.c.l.b16 %v245
      %v352 = vunpack.c.l.b16 %v246
      %v353 = vunpack.c.l.b16 %v247
      %v354 = vunpack.c.l.b16 %v248
      %v355 = vunpack.c.l.b16 %v249
      %v356 = vunpack.c.l.b16 %v250
      %v357 = vunpack.c.l.b16 %v251
      %v358 = vunpack.c.l.b16 %v252
      %v359 = vunpack.c.l.b16 %v253
      %v360 = vpack.c.b16 %v345, %v344
      %v361 = vpack.c.b16 %v347, %v346
      %v362 = vpack.c.b16 %v349, %v348
      %v363 = vpack.c.b16 %v351, %v350
      %v364 = vpack.c.b16 %v353, %v352
      %v365 = vpack.c.b16 %v355, %v354
      %v366 = vpack.c.b16 %v357, %v356
      %v367 = vpack.c.b16 %v359, %v358
      %vm368 = vcmask 261120
      %v370 = vsel %vm368, %v360, 0
      %v373 = vsel %vm368, %v361, 0
      %v376 = vsel %vm368, %v362, 0
      %v379 = vsel %vm368, %v363, 0
      %v382 = vsel %vm368, %v364, 0
      %v385 = vsel %vm368, %v365, 0
      %v388 = vsel %vm368, %v366, 0
      %v391 = vsel %vm368, %v367, 0
      %393 = vmatprep.subr.bf16.mxu0 0
      %394 = vmatpush1.bf16.msra.mxu0 0
      %395 = vmatprep.subr.bf16.mxu0 0
      %396 = vmatpush1.bf16.msra.mxu0 0
      %397 = vmatprep.subr.bf16.mxu0 0
      %398 = vmatpush1.bf16.msra.mxu0 0
      %399 = vmatprep.subr.bf16.mxu0 0
      %400 = vmatpush1.bf16.msra.mxu0 0
      %401 = vmatprep.subr.bf16.mxu0 0
      %402 = vmatpush1.bf16.msra.mxu0 0
      %403 = vmatprep.subr.bf16.mxu0 0
      %404 = vmatpush1.bf16.msra.mxu0 0
      %405 = vmatprep.subr.bf16.mxu0 0
      %406 = vmatpush1.bf16.msra.mxu0 %v267
      %407 = vmatprep.subr.bf16.mxu0 0
      %408 = vmatpush1.bf16.msra.mxu0 %v266
      %409 = vmatprep.subr.bf16.mxu0 0
      %410 = vmatpush2.bf16.msra.mxu0 0
      %411 = vmatprep.subr.bf16.mxu0 0
      %412 = vmatpush2.bf16.msra.mxu0 0
      %413 = vmatprep.subr.bf16.mxu0 0
      %414 = vmatpush2.bf16.msra.mxu0 0
      %415 = vmatprep.subr.bf16.mxu0 0
      %416 = vmatpush2.bf16.msra.mxu0 0
      %417 = vmatprep.subr.bf16.mxu0 0
      %418 = vmatpush2.bf16.msra.mxu0 0
      %419 = vmatprep.subr.bf16.mxu0 0
      %420 = vmatpush2.bf16.msra.mxu0 0
      %421 = vmatprep.subr.bf16.mxu0 0
      %422 = vmatpush2.bf16.msra.mxu0 0
      %423 = vmatprep.subr.bf16.mxu0 0
      %424 = vmatpush2.bf16.msra.mxu0 0
      %425 = vmatprep.mubr.bf16.mxu0 0
      %426 = vmatmul.mubr.bf16.gmra.mxu0 %v370
      %v427 = vpop.f32.mrf.mxu0
      %v428 = vadd.f32 0.0, %v427
      %v429 = vpop.f32.mrf.mxu0
      %v430 = vpop.f32.mrf.mxu0
      %v431 = vadd.f32 0.0, %v430
      %v432 = vpop.f32.mrf.mxu0
      %433 = vmatprep.mubr.bf16.mxu0 0
      %434 = vmatmul.mubr.bf16.gmra.mxu0 %v373
      %v435 = vpop.f32.mrf.mxu0
      %v436 = vadd.f32 0.0, %v435
      %v437 = vpop.f32.mrf.mxu0
      %v438 = vpop.f32.mrf.mxu0
      %v439 = vadd.f32 0.0, %v438
      %v440 = vpop.f32.mrf.mxu0
      %441 = vmatprep.mubr.bf16.mxu0 0
      %442 = vmatmul.mubr.bf16.gmra.mxu0 %v376
      %v443 = vpop.f32.mrf.mxu0
      %v444 = vadd.f32 0.0, %v443
      %v445 = vpop.f32.mrf.mxu0
      %v446 = vpop.f32.mrf.mxu0
      %v447 = vadd.f32 0.0, %v446
      %v448 = vpop.f32.mrf.mxu0
      %449 = vmatprep.mubr.bf16.mxu0 0
      %450 = vmatmul.mubr.bf16.gmra.mxu0 %v379
      %v451 = vpop.f32.mrf.mxu0
      %v452 = vadd.f32 0.0, %v451
      %v453 = vpop.f32.mrf.mxu0
      %v454 = vpop.f32.mrf.mxu0
      %v455 = vadd.f32 0.0, %v454
      %v456 = vpop.f32.mrf.mxu0
      %457 = vmatprep.mubr.bf16.mxu0 0
      %458 = vmatmul.mubr.bf16.gmra.mxu0 %v382
      %v459 = vpop.f32.mrf.mxu0
      %v460 = vadd.f32 0.0, %v459
      %v461 = vpop.f32.mrf.mxu0
      %v462 = vpop.f32.mrf.mxu0
      %v463 = vadd.f32 0.0, %v462
      %v464 = vpop.f32.mrf.mxu0
      %465 = vmatprep.mubr.bf16.mxu0 0
      %466 = vmatmul.mubr.bf16.gmra.mxu0 %v385
      %v467 = vpop.f32.mrf.mxu0
      %v468 = vadd.f32 0.0, %v467
      %v469 = vpop.f32.mrf.mxu0
      %v470 = vpop.f32.mrf.mxu0
      %v471 = vadd.f32 0.0, %v470
      %v472 = vpop.f32.mrf.mxu0
      %473 = vmatprep.mubr.bf16.mxu0 0
      %474 = vmatmul.mubr.bf16.gmra.mxu0 %v388
      %v475 = vpop.f32.mrf.mxu0
      %v476 = vadd.f32 0.0, %v475
      %v477 = vpop.f32.mrf.mxu0
      %v478 = vpop.f32.mrf.mxu0
      %v479 = vadd.f32 0.0, %v478
      %v480 = vpop.f32.mrf.mxu0
      %481 = vmatprep.mubr.bf16.mxu0 0
      %482 = vmatmul.mubr.bf16.gmra.mxu0 %v391
      %v483 = vpop.f32.mrf.mxu0
      %v484 = vadd.f32 0.0, %v483
      %v485 = vpop.f32.mrf.mxu0
      %v486 = vpop.f32.mrf.mxu0
      %v487 = vadd.f32 0.0, %v486
      %v488 = vpop.f32.mrf.mxu0
      %489 = vdwg.mxu0
      %v490 = vlaneseq
      %v491 = vand.u32 %v490, 127
      %s492 = smul.u32 %s20, 128
      %v493 = vstv %s492
      %v494 = vadd.s32 %v491, %v493
      %vm495 = vcmp.lt.s32.totalorder %v494, 64
      %v496 = vsel %vm495, %v428, -inf
      %v497 = vsel %vm495, %v431, -inf
      %v498 = vsel %vm495, %v436, -inf
      %v499 = vsel %vm495, %v439, -inf
      %v500 = vsel %vm495, %v444, -inf
      %v501 = vsel %vm495, %v447, -inf
      %v502 = vsel %vm495, %v452, -inf
      %v503 = vsel %vm495, %v455, -inf
      %v504 = vsel %vm495, %v460, -inf
      %v505 = vsel %vm495, %v463, -inf
      %v506 = vsel %vm495, %v468, -inf
      %v507 = vsel %vm495, %v471, -inf
      %v508 = vsel %vm495, %v476, -inf
      %v509 = vsel %vm495, %v479, -inf
      %v510 = vsel %vm495, %v484, -inf
      %v511 = vsel %vm495, %v487, -inf
      %v512 = vld [vmem:[#allocation3] sm:$0xff]
      %v513 = vld [vmem:[#allocation3 + $0x8] sm:$0xff]
      %v514 = vld [vmem:[#allocation3 + $0x10] sm:$0xff]
      %v515 = vld [vmem:[#allocation3 + $0x18] sm:$0xff]
      %v516 = vld [vmem:[#allocation3 + $0x20] sm:$0xff]
      %v517 = vld [vmem:[#allocation3 + $0x28] sm:$0xff]
      %v518 = vld [vmem:[#allocation3 + $0x30] sm:$0xff]
      %v519 = vld [vmem:[#allocation3 + $0x38] sm:$0xff]
      %v520 = vld [vmem:[#allocation3 + $0x40] sm:$0xff]
      %v521 = vld [vmem:[#allocation3 + $0x48] sm:$0xff]
      %v522 = vld [vmem:[#allocation3 + $0x50] sm:$0xff]
      %v523 = vld [vmem:[#allocation3 + $0x58] sm:$0xff]
      %v524 = vld [vmem:[#allocation3 + $0x60] sm:$0xff]
      %v525 = vld [vmem:[#allocation3 + $0x68] sm:$0xff]
      %v526 = vld [vmem:[#allocation3 + $0x70] sm:$0xff]
      %v527 = vld [vmem:[#allocation3 + $0x78] sm:$0xff]
      %528 = vmax.xlane.f32.xlu0 %v496
      %v529 = vpop.xlane.xlu0 %528
      %530 = vmax.xlane.f32.xlu0 %v497
      %v531 = vpop.xlane.xlu0 %530
      %532 = vmax.xlane.f32.xlu0 %v498
      %v533 = vpop.xlane.xlu0 %532
      %534 = vmax.xlane.f32.xlu0 %v499
      %v535 = vpop.xlane.xlu0 %534
      %536 = vmax.xlane.f32.xlu0 %v500
      %v537 = vpop.xlane.xlu0 %536
      %538 = vmax.xlane.f32.xlu0 %v501
      %v539 = vpop.xlane.xlu0 %538
      %540 = vmax.xlane.f32.xlu0 %v502
      %v541 = vpop.xlane.xlu0 %540
      %542 = vmax.xlane.f32.xlu0 %v503
      %v543 = vpop.xlane.xlu0 %542
      %544 = vmax.xlane.f32.xlu0 %v504
      %v545 = vpop.xlane.xlu0 %544
      %546 = vmax.xlane.f32.xlu0 %v505
      %v547 = vpop.xlane.xlu0 %546
      %548 = vmax.xlane.f32.xlu0 %v506
      %v549 = vpop.xlane.xlu0 %548
      %550 = vmax.xlane.f32.xlu0 %v507
      %v551 = vpop.xlane.xlu0 %550
      %552 = vmax.xlane.f32.xlu0 %v508
      %v553 = vpop.xlane.xlu0 %552
      %554 = vmax.xlane.f32.xlu0 %v509
      %v555 = vpop.xlane.xlu0 %554
      %556 = vmax.xlane.f32.xlu0 %v510
      %v557 = vpop.xlane.xlu0 %556
      %558 = vmax.xlane.f32.xlu0 %v511
      %v559 = vpop.xlane.xlu0 %558
      %v560 = vmax.f32 %v512, %v529
      %v561 = vmax.f32 %v513, %v531
      %v562 = vmax.f32 %v514, %v533
      %v563 = vmax.f32 %v515, %v535
      %v564 = vmax.f32 %v516, %v537
      %v565 = vmax.f32 %v517, %v539
      %v566 = vmax.f32 %v518, %v541
      %v567 = vmax.f32 %v519, %v543
      %v568 = vmax.f32 %v520, %v545
      %v569 = vmax.f32 %v521, %v547
      %v570 = vmax.f32 %v522, %v549
      %v571 = vmax.f32 %v523, %v551
      %v572 = vmax.f32 %v524, %v553
      %v573 = vmax.f32 %v525, %v555
      %v574 = vmax.f32 %v526, %v557
      %v575 = vmax.f32 %v527, %v559
      %576 = vst.msk [vmem:[#allocation3] sm:$0xff] %vm323, %v560
      %577 = vst.msk [vmem:[#allocation3 + $0x8] sm:$0xff] %vm323, %v561
      %578 = vst.msk [vmem:[#allocation3 + $0x10] sm:$0xff] %vm323, %v562
      %579 = vst.msk [vmem:[#allocation3 + $0x18] sm:$0xff] %vm323, %v563
      %580 = vst.msk [vmem:[#allocation3 + $0x20] sm:$0xff] %vm323, %v564
      %581 = vst.msk [vmem:[#allocation3 + $0x28] sm:$0xff] %vm323, %v565
      %582 = vst.msk [vmem:[#allocation3 + $0x30] sm:$0xff] %vm323, %v566
      %583 = vst.msk [vmem:[#allocation3 + $0x38] sm:$0xff] %vm323, %v567
      %584 = vst.msk [vmem:[#allocation3 + $0x40] sm:$0xff] %vm323, %v568
      %585 = vst.msk [vmem:[#allocation3 + $0x48] sm:$0xff] %vm323, %v569
      %586 = vst.msk [vmem:[#allocation3 + $0x50] sm:$0xff] %vm323, %v570
      %587 = vst.msk [vmem:[#allocation3 + $0x58] sm:$0xff] %vm323, %v571
      %588 = vst.msk [vmem:[#allocation3 + $0x60] sm:$0xff] %vm323, %v572
      %589 = vst.msk [vmem:[#allocation3 + $0x68] sm:$0xff] %vm323, %v573
      %590 = vst.msk [vmem:[#allocation3 + $0x70] sm:$0xff] %vm323, %v574
      %591 = vst.msk [vmem:[#allocation3 + $0x78] sm:$0xff] %vm323, %v575
      // Predicated region
      $region33: #{tpu_custom_call.1} parent=27 // pred_check
        %p592 = pneg %p209
      $region34: #{tpu_custom_call.1} parent=27 // pred_check_branch
        %594 = sbr.rel (%p592) target = $region36
      $region35: #{tpu_custom_call.1} parent=27 // pred_region
        %v595 = vld [vmem:[#allocation2] sm:$0xff]
        %v596 = vld [vmem:[#allocation2 + $0x8] sm:$0xff]
        %v597 = vld [vmem:[#allocation2 + $0x10] sm:$0xff]
        %v598 = vld [vmem:[#allocation2 + $0x18] sm:$0xff]
        %v599 = vpack.c.bf16 %v596, %v595
        %v600 = vpack.c.bf16 %v598, %v597
        %601 = vmatprep.subr.bf16.mxu0 0
        %602 = vmatpush1.bf16.msra.mxu0 0
        %603 = vmatprep.subr.bf16.mxu0 0
        %604 = vmatpush1.bf16.msra.mxu0 0
        %605 = vmatprep.subr.bf16.mxu0 0
        %606 = vmatpush1.bf16.msra.mxu0 0
        %607 = vmatprep.subr.bf16.mxu0 0
        %608 = vmatpush1.bf16.msra.mxu0 0
        %609 = vmatprep.subr.bf16.mxu0 0
        %610 = vmatpush1.bf16.msra.mxu0 0
        %611 = vmatprep.subr.bf16.mxu0 0
        %612 = vmatpush1.bf16.msra.mxu0 0
        %613 = vmatprep.subr.bf16.mxu0 0
        %614 = vmatpush1.bf16.msra.mxu0 %v600
        %615 = vmatprep.subr.bf16.mxu0 0
        %616 = vmatpush1.bf16.msra.mxu0 %v599
        %617 = vmatprep.subr.bf16.mxu0 0
        %618 = vmatpush2.bf16.msra.mxu0 0
        %619 = vmatprep.subr.bf16.mxu0 0
        %620 = vmatpush2.bf16.msra.mxu0 0
        %621 = vmatprep.subr.bf16.mxu0 0
        %622 = vmatpush2.bf16.msra.mxu0 0
        %623 = vmatprep.subr.bf16.mxu0 0
        %624 = vmatpush2.bf16.msra.mxu0 0
        %625 = vmatprep.subr.bf16.mxu0 0
        %626 = vmatpush2.bf16.msra.mxu0 0
        %627 = vmatprep.subr.bf16.mxu0 0
        %628 = vmatpush2.bf16.msra.mxu0 0
        %629 = vmatprep.subr.bf16.mxu0 0
        %630 = vmatpush2.bf16.msra.mxu0 0
        %631 = vmatprep.subr.bf16.mxu0 0
        %632 = vmatpush2.bf16.msra.mxu0 0
        %633 = vmatprep.mubr.bf16.mxu0 0
        %634 = vmatmul.mubr.bf16.gmra.mxu0 %v370
        %v635 = vpop.f32.mrf.mxu0
        %v636 = vadd.f32 0.0, %v635
        %v637 = vpop.f32.mrf.mxu0
        %v638 = vpop.f32.mrf.mxu0
        %v639 = vadd.f32 0.0, %v638
        %v640 = vpop.f32.mrf.mxu0
        %641 = vmatprep.mubr.bf16.mxu0 0
        %642 = vmatmul.mubr.bf16.gmra.mxu0 %v373
        %v643 = vpop.f32.mrf.mxu0
        %v644 = vadd.f32 0.0, %v643
        %v645 = vpop.f32.mrf.mxu0
        %v646 = vpop.f32.mrf.mxu0
        %v647 = vadd.f32 0.0, %v646
        %v648 = vpop.f32.mrf.mxu0
        %649 = vmatprep.mubr.bf16.mxu0 0
        %650 = vmatmul.mubr.bf16.gmra.mxu0 %v376
        %v651 = vpop.f32.mrf.mxu0
        %v652 = vadd.f32 0.0, %v651
        %v653 = vpop.f32.mrf.mxu0
        %v654 = vpop.f32.mrf.mxu0
        %v655 = vadd.f32 0.0, %v654
        %v656 = vpop.f32.mrf.mxu0
        %657 = vmatprep.mubr.bf16.mxu0 0
        %658 = vmatmul.mubr.bf16.gmra.mxu0 %v379
        %v659 = vpop.f32.mrf.mxu0
        %v660 = vadd.f32 0.0, %v659
        %v661 = vpop.f32.mrf.mxu0
        %v662 = vpop.f32.mrf.mxu0
        %v663 = vadd.f32 0.0, %v662
        %v664 = vpop.f32.mrf.mxu0
        %665 = vmatprep.mubr.bf16.mxu0 0
        %666 = vmatmul.mubr.bf16.gmra.mxu0 %v382
        %v667 = vpop.f32.mrf.mxu0
        %v668 = vadd.f32 0.0, %v667
        %v669 = vpop.f32.mrf.mxu0
        %v670 = vpop.f32.mrf.mxu0
        %v671 = vadd.f32 0.0, %v670
        %v672 = vpop.f32.mrf.mxu0
        %673 = vmatprep.mubr.bf16.mxu0 0
        %674 = vmatmul.mubr.bf16.gmra.mxu0 %v385
        %v675 = vpop.f32.mrf.mxu0
        %v676 = vadd.f32 0.0, %v675
        %v677 = vpop.f32.mrf.mxu0
        %v678 = vpop.f32.mrf.mxu0
        %v679 = vadd.f32 0.0, %v678
        %v680 = vpop.f32.mrf.mxu0
        %681 = vmatprep.mubr.bf16.mxu0 0
        %682 = vmatmul.mubr.bf16.gmra.mxu0 %v388
        %v683 = vpop.f32.mrf.mxu0
        %v684 = vadd.f32 0.0, %v683
        %v685 = vpop.f32.mrf.mxu0
        %v686 = vpop.f32.mrf.mxu0
        %v687 = vadd.f32 0.0, %v686
        %v688 = vpop.f32.mrf.mxu0
        %689 = vmatprep.mubr.bf16.mxu0 0
        %690 = vmatmul.mubr.bf16.gmra.mxu0 %v391
        %v691 = vpop.f32.mrf.mxu0
        %v692 = vadd.f32 0.0, %v691
        %v693 = vpop.f32.mrf.mxu0
        %v694 = vpop.f32.mrf.mxu0
        %v695 = vadd.f32 0.0, %v694
        %v696 = vpop.f32.mrf.mxu0
        %697 = vdwg.mxu0
        %v698 = vmul.f32 %v636, 0.015625
        %v699 = vmul.f32 %v639, 0.015625
        %v700 = vmul.f32 %v644, 0.015625
        %v701 = vmul.f32 %v647, 0.015625
        %v702 = vmul.f32 %v652, 0.015625
        %v703 = vmul.f32 %v655, 0.015625
        %v704 = vmul.f32 %v660, 0.015625
        %v705 = vmul.f32 %v663, 0.015625
        %v706 = vmul.f32 %v668, 0.015625
        %v707 = vmul.f32 %v671, 0.015625
        %v708 = vmul.f32 %v676, 0.015625
        %v709 = vmul.f32 %v679, 0.015625
        %v710 = vmul.f32 %v684, 0.015625
        %v711 = vmul.f32 %v687, 0.015625
        %v712 = vmul.f32 %v692, 0.015625
        %v713 = vmul.f32 %v695, 0.015625
        %v714 = vld [vmem:[#allocation3] sm:$0xff]
        %v715 = vld [vmem:[#allocation3 + $0x8] sm:$0xff]
        %v716 = vld [vmem:[#allocation3 + $0x10] sm:$0xff]
        %v717 = vld [vmem:[#allocation3 + $0x18] sm:$0xff]
        %v718 = vld [vmem:[#allocation3 + $0x20] sm:$0xff]
        %v719 = vld [vmem:[#allocation3 + $0x28] sm:$0xff]
        %v720 = vld [vmem:[#allocation3 + $0x30] sm:$0xff]
        %v721 = vld [vmem:[#allocation3 + $0x38] sm:$0xff]
        %v722 = vld [vmem:[#allocation3 + $0x40] sm:$0xff]
        %v723 = vld [vmem:[#allocation3 + $0x48] sm:$0xff]
        %v724 = vld [vmem:[#allocation3 + $0x50] sm:$0xff]
        %v725 = vld [vmem:[#allocation3 + $0x58] sm:$0xff]
        %v726 = vld [vmem:[#allocation3 + $0x60] sm:$0xff]
        %v727 = vld [vmem:[#allocation3 + $0x68] sm:$0xff]
        %v728 = vld [vmem:[#allocation3 + $0x70] sm:$0xff]
        %v729 = vld [vmem:[#allocation3 + $0x78] sm:$0xff]
        %v730 = vmul.f32 %v714, 0.2
        %v731 = vmul.f32 %v715, 0.2
        %v732 = vmul.f32 %v716, 0.2
        %v733 = vmul.f32 %v717, 0.2
        %v734 = vmul.f32 %v718, 0.2
        %v735 = vmul.f32 %v719, 0.2
        %v736 = vmul.f32 %v720, 0.2
        %v737 = vmul.f32 %v721, 0.2
        %v738 = vmul.f32 %v722, 0.2
        %v739 = vmul.f32 %v723, 0.2
        %v740 = vmul.f32 %v724, 0.2
        %v741 = vmul.f32 %v725, 0.2
        %v742 = vmul.f32 %v726, 0.2
        %v743 = vmul.f32 %v727, 0.2
        %v744 = vmul.f32 %v728, 0.2
        %v745 = vmul.f32 %v729, 0.2
        %v746 = vadd.f32 %v698, %v730
        %v747 = vadd.f32 %v699, %v731
        %v748 = vadd.f32 %v700, %v732
        %v749 = vadd.f32 %v701, %v733
        %v750 = vadd.f32 %v702, %v734
        %v751 = vadd.f32 %v703, %v735
        %v752 = vadd.f32 %v704, %v736
        %v753 = vadd.f32 %v705, %v737
        %v754 = vadd.f32 %v706, %v738
        %v755 = vadd.f32 %v707, %v739
        %v756 = vadd.f32 %v708, %v740
        %v757 = vadd.f32 %v709, %v741
        %v758 = vadd.f32 %v710, %v742
        %v759 = vadd.f32 %v711, %v743
        %v760 = vadd.f32 %v712, %v744
        %v761 = vadd.f32 %v713, %v745
        %762 = vst.msk [vmem:[%s205] sm:$0xff] %vm323, %v746
        %763 = vst.msk [vmem:[%s205 + $0x8] sm:$0xff] %vm323, %v747
        %764 = vst.msk [vmem:[%s205 + $0x10] sm:$0xff] %vm323, %v748
        %765 = vst.msk [vmem:[%s205 + $0x18] sm:$0xff] %vm323, %v749
        %766 = vst.msk [vmem:[%s205 + $0x20] sm:$0xff] %vm323, %v750
        %767 = vst.msk [vmem:[%s205 + $0x28] sm:$0xff] %vm323, %v751
        %768 = vst.msk [vmem:[%s205 + $0x30] sm:$0xff] %vm323, %v752
        %769 = vst.msk [vmem:[%s205 + $0x38] sm:$0xff] %vm323, %v753
        %770 = vst.msk [vmem:[%s205 + $0x40] sm:$0xff] %vm323, %v754
        %771 = vst.msk [vmem:[%s205 + $0x48] sm:$0xff] %vm323, %v755
        %772 = vst.msk [vmem:[%s205 + $0x50] sm:$0xff] %vm323, %v756
        %773 = vst.msk [vmem:[%s205 + $0x58] sm:$0xff] %vm323, %v757
        %774 = vst.msk [vmem:[%s205 + $0x60] sm:$0xff] %vm323, %v758
        %775 = vst.msk [vmem:[%s205 + $0x68] sm:$0xff] %vm323, %v759
        %776 = vst.msk [vmem:[%s205 + $0x70] sm:$0xff] %vm323, %v760
        %777 = vst.msk [vmem:[%s205 + $0x78] sm:$0xff] %vm323, %v761
      $region36: #{tpu_custom_call.1} parent=27 // pred_fallthru
        _
      %s778 = smul.u32 16, %s19
      %p779 = scmp.lt.s32.totalorder %s18, 1
      %s780 = scalar_select %p779, %s18, 1
      %p781 = scmp.lt.s32.totalorder %s778, 15
      %s782 = scalar_select %p781, %s778, 15
      %s783 = smul.addr %s780, 16
      %s784 = sadd.s32 %s782, %s783
      %s785 = smul.addr %s784, 8
      %s786 = scalar_lea.vmem %s2, %s785
      // Predicated region
      $region37: #{tpu_custom_call.1} parent=27 // pred_check
        %p787 = pneg %p106
      $region38: #{tpu_custom_call.1} parent=27 // pred_check_branch
        %789 = sbr.rel (%p787) target = $region40
      $region39: #{tpu_custom_call.1} parent=27 // pred_region
        %s790 = smul.u32 16, %s19
      $region40: #{tpu_custom_call.1} parent=27 // pred_fallthru
        _
    $region28: #{tpu_custom_call.1} parent=5 // pred_fallthru
      _
    %p791 = scmp.le.s32.totalorder 2, %s8
    // Predicated region
    $region41: #{tpu_custom_call.1} parent=5 // pred_check
      %p792 = pneg %p791
    $region42: #{tpu_custom_call.1} parent=5 // pred_check_branch
      %794 = sbr.rel (%p792) target = $region44
    $region43: #{tpu_custom_call.1} parent=5 // pred_region
      %s795 = ssub.s32 %s8, 2
      // Predicated region
      $region45: #{tpu_custom_call.1} parent=43 // pred_check
        %p796 = pneg %p112
      $region46: #{tpu_custom_call.1} parent=43 // pred_check_branch
        %798 = sbr.rel (%p796) target = $region48
      $region47: #{tpu_custom_call.1} parent=43 // pred_region
        %s799 = smul.u32 16, %s22
        %p800 = scmp.lt.s32.totalorder %s21, 1
        %s801 = scalar_select %p800, %s21, 1
        %p802 = scmp.lt.s32.totalorder %s799, 15
        %s803 = scalar_select %p802, %s799, 15
        %s804 = smul.addr %s801, 16
        %s805 = sadd.s32 %s803, %s804
        %s806 = smul.addr %s805, 8
        %s807 = scalar_lea.vmem %s2, %s806
      $region48: #{tpu_custom_call.1} parent=43 // pred_fallthru
        _
    $region44: #{tpu_custom_call.1} parent=5 // pred_fallthru
      _
  $region6: #{tpu_custom_call.1} parent=0 // loop_footer
    %s12 = sadd.s32 1, %s8
  $region7: #{tpu_custom_call.1} parent=0 // loop_footer_branch
    %7 = sbr.rel target = $region3
  $region8: #{tpu_custom_call.1} parent=0 // loop_exit
    _

</llo_original>
